<compile_context>
chip_gen: v5e
topology: v5e:2x2
jax: 0.10.0
libtpu: 0.0.40
codegen_flags: <defaults>
</compile_context>

<pallas_src>
import functools

import jax
import jax.numpy as jnp
from jax.experimental import pallas as pl
from jax.experimental.pallas import tpu as pltpu


def _round_up(x, m):
    return ((x + m - 1) // m) * m


def _f32_vmem_bytes(shape):
    """Approximate padded VMEM footprint of one f32 block ((8,128) tiling)."""
    shape = tuple(int(d) for d in shape)
    if len(shape) == 1:
        shape = (1,) + shape
    lead = 1
    for d in shape[:-2]:
        lead *= d
    return lead * _round_up(shape[-2], 8) * _round_up(shape[-1], 128) * 4


def _pick_batch_tile(B, row_bytes, *, max_rows=512, target_bytes=4 << 20):
    """Batch tile: big enough to approach HBM roofline, >=2 grid steps if possible."""
    b_pad8 = _round_up(max(B, 1), 8)
    tb = (target_bytes // max(row_bytes, 1)) // 8 * 8
    tb = int(max(8, min(tb, max_rows)))
    tb = min(tb, b_pad8)
    # Keep at least 2 grid steps when the batch allows it, so v7x's two
    # TensorCores both get work under dimension_semantics=("parallel",).
    if b_pad8 >= 16:
        tb = min(tb, _round_up((b_pad8 + 1) // 2, 8))
    return tb


def _recip(x):
    """1/x via EUP approx reciprocal + one Newton-Raphson step (~1 ulp)."""
    r = pl.reciprocal(x, approx=True)
    return r * (2.0 - x * r)


def _mixture_pl_kernel(hs_ref, w1_ref, b1_ref, w2_ref, b2_ref, wc_ref, bc_ref,
                       gate_ref, comp_ref, *, num_items, hidden):
    """One batch tile: gate MLP + per-item reward projection + Plackett-Luce."""
    N, H = num_items, hidden

    # Per-item views of the dense (tb, N*H) tile: static lane slices, no copies.
    items = [hs_ref[:, n * H:(n + 1) * H] for n in range(N)]

    # ---------------- gate network on the item-mean context ----------------
    # 1/N is pre-folded into gate_w1 by the wrapper, so a plain sum suffices.
    ctx = items[0]
    for n in range(1, N):
        ctx = ctx + items[n]
    g1 = jnp.dot(ctx, w1_ref[...], preferred_element_type=jnp.float32) + b1_ref[...]
    g1 = jnp.maximum(g1, 0.0)
    logits = jnp.dot(g1, w2_ref[...], preferred_element_type=jnp.float32) + b2_ref[...]
    logits = logits - jnp.max(logits, axis=-1, keepdims=True)
    eg = jnp.exp(logits)
    gate_ref[...] = eg * _recip(jnp.sum(eg, axis=-1, keepdims=True))   # one bulk store

    # ------------- per-item reward projection (no concat copy) -------------
    # comp_w / comp_b are pre-scaled by 1/temperature, so these are the
    # "scaled_rewards" of the torch module.
    wc = wc_ref[...]
    bc = bc_ref[...]
    vals = [jnp.dot(items[n], wc, preferred_element_type=jnp.float32) + bc
            for n in range(N)]                                         # N x (tb, C)

    # ------------- Plackett-Luce suffix softmax over the items -------------
    # Descending sort across items with an odd-even transposition network
    # (N is tiny & static); equal values give identical probabilities, so the
    # exact tie order of torch.sort does not matter for the outputs.
    for rnd in range(N):
        for j in range(rnd % 2, N - 1, 2):
            hi = jnp.maximum(vals[j], vals[j + 1])
            lo = jnp.minimum(vals[j], vals[j + 1])
            vals[j], vals[j + 1] = hi, lo

    # Per-position-shift recurrence (numerically safe: exp arg <= 0, S <= N):
    #   S_{N-1} = 1,  S_pos = 1 + exp(v[pos+1] - v[pos]) * S_{pos+1},
    #   prob[pos] = 1 / S_pos.
    probs = [None] * N
    probs[N - 1] = jnp.ones_like(vals[0])
    s = jnp.ones_like(vals[0])
    for pos in range(N - 2, -1, -1):
        s = 1.0 + jnp.exp(vals[pos + 1] - vals[pos]) * s
        probs[pos] = _recip(s)

    # Single lane-contiguous bulk store of the whole (tb, N*C) result.
    comp_ref[...] = jnp.concatenate(probs, axis=1)


def mixture_plackett_luce(hidden_states, params, *, temperature=1.0,
                          max_batch_tile=512):
    """hidden_states: (B, N, H) float32. Returns dict matching the torch module."""
    B, N, H = hidden_states.shape
    C = params['comp_b'].shape[-1]

    # Fold 1/temperature into the component projection and 1/N (context mean)
    # into the first gate layer, once, outside the kernel.
    inv_t = 1.0 / float(temperature)
    comp_w = params['comp_w'] * inv_t
    comp_b = params['comp_b'] * inv_t
    gate_w1 = params['gate_w1'] * (1.0 / N)

    row_bytes = N * H * 4
    tb = _pick_batch_tile(B, row_bytes, max_rows=max_batch_tile)
    b_pad = _round_up(B, tb)

    hs2d = hidden_states.reshape(B, N * H)          # free, row-major reshape
    if b_pad != B:
        hs2d = jnp.pad(hs2d, ((0, b_pad - B), (0, 0)))

    grid = (b_pad // tb,)

    # VMEM budget: every block (including constant-index "resident" weights)
    # is double-buffered by the pipeline; keep the cap <= v7x's 64 MiB VMEM.
    # (On v5e/v6e with 128 MiB physical VMEM, max_batch_tile / the cap could
    # be raised further.)
    block_shapes = [(tb, N * H), gate_w1.shape, params['gate_b1'].shape,
                    params['gate_w2'].shape, params['gate_b2'].shape,
                    comp_w.shape, comp_b.shape, (tb, C), (tb, N * C)]
    vmem_est = 2 * sum(_f32_vmem_bytes(s) for s in block_shapes)
    vmem_limit = int(min(64 * 1024 * 1024,
                         max(32 * 1024 * 1024, vmem_est + (8 << 20))))

    gate, comp_flat = pl.pallas_call(
        functools.partial(_mixture_pl_kernel, num_items=N, hidden=H),
        out_shape=(jax.ShapeDtypeStruct((b_pad, C), jnp.float32),       # gate_weights
                   jax.ShapeDtypeStruct((b_pad, N * C), jnp.float32)),  # component_rankings (flat)
        grid=grid,
        in_specs=[
            pl.BlockSpec((tb, N * H), lambda b: (b, 0)),                 # streamed batch tile
            pl.BlockSpec(gate_w1.shape, lambda b: (0, 0)),               # resident weights
            pl.BlockSpec(params['gate_b1'].shape, lambda b: (0, 0)),
            pl.BlockSpec(params['gate_w2'].shape, lambda b: (0, 0)),
            pl.BlockSpec(params['gate_b2'].shape, lambda b: (0, 0)),
            pl.BlockSpec(comp_w.shape, lambda b: (0, 0)),
            pl.BlockSpec(comp_b.shape, lambda b: (0, 0)),
        ],
        out_specs=(pl.BlockSpec((tb, C), lambda b: (b, 0)),
                   pl.BlockSpec((tb, N * C), lambda b: (b, 0))),
        compiler_params=pltpu.CompilerParams(
            dimension_semantics=("parallel",),       # megacore / 2 TCs on v7x
            vmem_limit_bytes=vmem_limit),
    )(hs2d, gate_w1, params['gate_b1'], params['gate_w2'], params['gate_b2'],
      comp_w, comp_b)

    gate = gate[:B]
    comp = comp_flat[:B].reshape(B, N, C)

    # Mixture combination on the tiny (B, C) tensors in plain XLA, reproducing
    # the torch broadcast exactly:
    #   (B,N,C) * (B,1,1,C) -> (B,B,N,C), summed over dim=2 -> (B,B,C)
    #   mix[i, j, c] = gate[i, c] * sum_n comp[j, n, c]
    # TODO(synk): this quadratic (B, B, C) output is what the torch code
    # produces via broadcasting; confirm it is intended downstream.
    comp_sum = comp.sum(axis=1)                            # (B, C)
    mix = gate[:, None, :] * comp_sum[None, :, :]          # (B, B, C)

    return {
        'mixture_ranking': mix,
        'component_rankings': comp,
        'gate_weights': gate,
        'hidden_states': hidden_states,
    }


# TODO(synk): BaseRewardModel backbone is not specified in the source module;
# use a deterministic embedding + masked mean-pooling as the synthetic
# hidden-state extractor (plain JAX glue, not the Pallas hot path).
def synthetic_reward_hidden(input_ids, attention_mask, embedding):
    emb = embedding[input_ids]                             # (B, S, H)
    m = attention_mask[..., None].astype(jnp.float32)
    return (emb * m).sum(axis=1) / jnp.maximum(m.sum(axis=1), 1.0)


def _ref_forward(hidden_states, params, temperature):
    """Pure-JAX mirror of the PyTorch forward, for a correctness check."""
    context = hidden_states.mean(axis=1)
    g1 = jax.nn.relu(context @ params['gate_w1'] + params['gate_b1'])
    gate = jax.nn.softmax(g1 @ params['gate_w2'] + params['gate_b2'], axis=-1)
    rewards = jnp.einsum('bnh,hc->bnc', hidden_states, params['comp_w']) + params['comp_b']
    scaled = rewards / temperature
    srt = -jnp.sort(-scaled, axis=1)                       # descending along items
    N = hidden_states.shape[1]
    probs = [jax.nn.softmax(srt[:, pos:, :], axis=1)[:, 0, :] for pos in range(N)]
    comp = jnp.stack(probs, axis=1)                        # (B, N, C)
    mix = gate[:, None, :] * comp.sum(axis=1)[None, :, :]  # (B, B, C), torch broadcast
    return mix, comp, gate


if __name__ == "__main__":
    B, N, S, H, C, V = 2, 4, 8, 32, 3, 64
    H2 = H // 2
    temperature = 1.0

    key = jax.random.PRNGKey(0)
    keys = jax.random.split(key, 12)

    embedding = jax.random.normal(keys[0], (V, H), jnp.float32) * 0.1
    params = {
        'gate_w1': jax.random.normal(keys[1], (H, H2), jnp.float32) / jnp.sqrt(H).astype(jnp.float32),
        'gate_b1': jax.random.normal(keys[2], (1, H2), jnp.float32) * 0.01,
        'gate_w2': jax.random.normal(keys[3], (H2, C), jnp.float32) / jnp.sqrt(H2).astype(jnp.float32),
        'gate_b2': jax.random.normal(keys[4], (1, C), jnp.float32) * 0.01,
        'comp_w': jax.random.normal(keys[5], (H, C), jnp.float32) / jnp.sqrt(H).astype(jnp.float32),
        'comp_b': jax.random.normal(keys[6], (1, C), jnp.float32) * 0.01,
    }

    input_ids_list = [jax.random.randint(keys[7 + i], (B, S), 0, V) for i in range(N)]
    lengths = jax.random.randint(keys[11], (N, B), 1, S + 1)
    attention_mask_list = [
        (jnp.arange(S)[None, :] < lengths[i][:, None]).astype(jnp.float32)
        for i in range(N)
    ]

    hidden_states = jnp.stack(
        [synthetic_reward_hidden(ids, m, embedding)
         for ids, m in zip(input_ids_list, attention_mask_list)],
        axis=1)                                            # (B, N, H)

    out = mixture_plackett_luce(hidden_states, params, temperature=temperature)
    jax.block_until_ready(out)

    mix_ref, comp_ref, gate_ref = _ref_forward(hidden_states, params, temperature)
    assert out['mixture_ranking'].shape == (B, B, C)
    assert out['component_rankings'].shape == (B, N, C)
    assert out['gate_weights'].shape == (B, C)
    assert jnp.allclose(out['gate_weights'], gate_ref, atol=1e-5, rtol=1e-5)
    assert jnp.allclose(out['component_rankings'], comp_ref, atol=1e-5, rtol=1e-5)
    assert jnp.allclose(out['mixture_ranking'], mix_ref, atol=1e-5, rtol=1e-5)

    print("KERNEL_OK")
</pallas_src>

<mosaic_0001>
module attributes {stable_mosaic.version = 11 : i64} {
  func.func @_mixture_pl_kernel(%arg0: i32, %arg1: memref<8x128xf32, #tpu.memory_space<vmem>>, %arg2: memref<32x16xf32, #tpu.memory_space<vmem>>, %arg3: memref<1x16xf32, #tpu.memory_space<vmem>>, %arg4: memref<16x3xf32, #tpu.memory_space<vmem>>, %arg5: memref<1x3xf32, #tpu.memory_space<vmem>>, %arg6: memref<32x3xf32, #tpu.memory_space<vmem>>, %arg7: memref<1x3xf32, #tpu.memory_space<vmem>>, %arg8: memref<8x3xf32, #tpu.memory_space<vmem>>, %arg9: memref<8x12xf32, #tpu.memory_space<vmem>>) attributes {dimension_semantics = [#tpu.dimension_semantics<parallel>], iteration_bounds = array<i64: 1>, scalar_prefetch = 0 : i64, scratch_operands = 0 : i64, tpu.core_type = #tpu.core_type<tc>, window_params = [{transform_indices = @transform_0, window_bounds = array<i64: 8, 128>}, {pipeline_mode = #tpu.pipeline_mode<synchronous>, transform_indices = @transform_1, window_bounds = array<i64: 32, 16>}, {pipeline_mode = #tpu.pipeline_mode<synchronous>, transform_indices = @transform_2, window_bounds = array<i64: 1, 16>}, {pipeline_mode = #tpu.pipeline_mode<synchronous>, transform_indices = @transform_3, window_bounds = array<i64: 16, 3>}, {pipeline_mode = #tpu.pipeline_mode<synchronous>, transform_indices = @transform_4, window_bounds = array<i64: 1, 3>}, {pipeline_mode = #tpu.pipeline_mode<synchronous>, transform_indices = @transform_5, window_bounds = array<i64: 32, 3>}, {pipeline_mode = #tpu.pipeline_mode<synchronous>, transform_indices = @transform_6, window_bounds = array<i64: 1, 3>}, {transform_indices = @transform_7, window_bounds = array<i64: 8, 3>}, {transform_indices = @transform_8, window_bounds = array<i64: 8, 12>}]} {
    %c0 = arith.constant 0 : index
    %c0_0 = arith.constant 0 : index
    %0 = vector.load %arg1[%c0, %c0_0] : memref<8x128xf32, #tpu.memory_space<vmem>>, vector<8x32xf32>
    %c0_1 = arith.constant 0 : index
    %c32 = arith.constant 32 : index
    %1 = vector.load %arg1[%c0_1, %c32] : memref<8x128xf32, #tpu.memory_space<vmem>>, vector<8x32xf32>
    %c0_2 = arith.constant 0 : index
    %c64 = arith.constant 64 : index
    %2 = vector.load %arg1[%c0_2, %c64] : memref<8x128xf32, #tpu.memory_space<vmem>>, vector<8x32xf32>
    %c0_3 = arith.constant 0 : index
    %c96 = arith.constant 96 : index
    %3 = vector.load %arg1[%c0_3, %c96] : memref<8x128xf32, #tpu.memory_space<vmem>>, vector<8x32xf32>
    %4 = arith.addf %0, %1 : vector<8x32xf32>
    %5 = arith.addf %4, %2 : vector<8x32xf32>
    %6 = arith.addf %5, %3 : vector<8x32xf32>
    %c0_4 = arith.constant 0 : index
    %c0_5 = arith.constant 0 : index
    %7 = vector.load %arg2[%c0_4, %c0_5] : memref<32x16xf32, #tpu.memory_space<vmem>>, vector<32x16xf32>
    %cst = arith.constant dense<0.000000e+00> : vector<8x16xf32>
    %8 = tpu.matmul %6, %7, %cst {dimension_numbers = #tpu.dot_dimension_numbers<[1], [0], [0], [1], [0, 0, 1, 1], [], []>} : vector<8x32xf32>, vector<32x16xf32>, vector<8x16xf32> -> vector<8x16xf32>
    %c0_6 = arith.constant 0 : index
    %c0_7 = arith.constant 0 : index
    %9 = vector.load %arg3[%c0_6, %c0_7] : memref<1x16xf32, #tpu.memory_space<vmem>>, vector<1x16xf32>
    %10 = vector.broadcast %9 : vector<1x16xf32> to vector<8x16xf32>
    %11 = arith.addf %8, %10 : vector<8x16xf32>
    %cst_8 = arith.constant 0.000000e+00 : f32
    %12 = vector.broadcast %cst_8 : f32 to vector<8x16xf32>
    %13 = arith.maximumf %11, %12 : vector<8x16xf32>
    %c0_9 = arith.constant 0 : index
    %c0_10 = arith.constant 0 : index
    %14 = vector.load %arg4[%c0_9, %c0_10] : memref<16x3xf32, #tpu.memory_space<vmem>>, vector<16x3xf32>
    %cst_11 = arith.constant dense<0.000000e+00> : vector<8x3xf32>
    %15 = tpu.matmul %13, %14, %cst_11 {dimension_numbers = #tpu.dot_dimension_numbers<[1], [0], [0], [1], [0, 0, 1, 1], [], []>} : vector<8x16xf32>, vector<16x3xf32>, vector<8x3xf32> -> vector<8x3xf32>
    %c0_12 = arith.constant 0 : index
    %c0_13 = arith.constant 0 : index
    %16 = vector.load %arg5[%c0_12, %c0_13] : memref<1x3xf32, #tpu.memory_space<vmem>>, vector<1x3xf32>
    %17 = vector.broadcast %16 : vector<1x3xf32> to vector<8x3xf32>
    %18 = arith.addf %15, %17 : vector<8x3xf32>
    %cst_14 = arith.constant dense<0xFF800000> : vector<8xf32>
    %19 = vector.multi_reduction <maximumf>, %18, %cst_14 [1] : vector<8x3xf32> to vector<8xf32>
    %20 = vector.shape_cast %19 : vector<8xf32> to vector<8x1xf32>
    %21 = vector.broadcast %20 : vector<8x1xf32> to vector<8x3xf32>
    %22 = arith.subf %18, %21 : vector<8x3xf32>
    %23 = math.exp %22 : vector<8x3xf32>
    %cst_15 = arith.constant dense<0.000000e+00> : vector<8xf32>
    %24 = vector.multi_reduction <add>, %23, %cst_15 [1] : vector<8x3xf32> to vector<8xf32>
    %25 = vector.shape_cast %24 : vector<8xf32> to vector<8x1xf32>
    %26 = tpu.reciprocal %25 {approx = true} : vector<8x1xf32> -> vector<8x1xf32>
    %27 = arith.mulf %25, %26 : vector<8x1xf32>
    %cst_16 = arith.constant 2.000000e+00 : f32
    %28 = vector.broadcast %cst_16 : f32 to vector<8x1xf32>
    %29 = arith.subf %28, %27 : vector<8x1xf32>
    %30 = arith.mulf %26, %29 : vector<8x1xf32>
    %31 = vector.broadcast %30 : vector<8x1xf32> to vector<8x3xf32>
    %32 = arith.mulf %23, %31 : vector<8x3xf32>
    %c0_17 = arith.constant 0 : index
    %c0_18 = arith.constant 0 : index
    %33 = vector.load %arg8[%c0_17, %c0_18] : memref<8x3xf32, #tpu.memory_space<vmem>>, vector<8x3xf32>
    tpu.vector_store %arg8[%c0_17, %c0_18], %32 {strides = array<i32>} : memref<8x3xf32, #tpu.memory_space<vmem>>, vector<8x3xf32>,
    %c0_19 = arith.constant 0 : index
    %c0_20 = arith.constant 0 : index
    %34 = vector.load %arg6[%c0_19, %c0_20] : memref<32x3xf32, #tpu.memory_space<vmem>>, vector<32x3xf32>
    %c0_21 = arith.constant 0 : index
    %c0_22 = arith.constant 0 : index
    %35 = vector.load %arg7[%c0_21, %c0_22] : memref<1x3xf32, #tpu.memory_space<vmem>>, vector<1x3xf32>
    %cst_23 = arith.constant dense<0.000000e+00> : vector<8x3xf32>
    %36 = tpu.matmul %0, %34, %cst_23 {dimension_numbers = #tpu.dot_dimension_numbers<[1], [0], [0], [1], [0, 0, 1, 1], [], []>} : vector<8x32xf32>, vector<32x3xf32>, vector<8x3xf32> -> vector<8x3xf32>
    %37 = vector.broadcast %35 : vector<1x3xf32> to vector<8x3xf32>
    %38 = arith.addf %36, %37 : vector<8x3xf32>
    %cst_24 = arith.constant dense<0.000000e+00> : vector<8x3xf32>
    %39 = tpu.matmul %1, %34, %cst_24 {dimension_numbers = #tpu.dot_dimension_numbers<[1], [0], [0], [1], [0, 0, 1, 1], [], []>} : vector<8x32xf32>, vector<32x3xf32>, vector<8x3xf32> -> vector<8x3xf32>
    %40 = vector.broadcast %35 : vector<1x3xf32> to vector<8x3xf32>
    %41 = arith.addf %39, %40 : vector<8x3xf32>
    %cst_25 = arith.constant dense<0.000000e+00> : vector<8x3xf32>
    %42 = tpu.matmul %2, %34, %cst_25 {dimension_numbers = #tpu.dot_dimension_numbers<[1], [0], [0], [1], [0, 0, 1, 1], [], []>} : vector<8x32xf32>, vector<32x3xf32>, vector<8x3xf32> -> vector<8x3xf32>
    %43 = vector.broadcast %35 : vector<1x3xf32> to vector<8x3xf32>
    %44 = arith.addf %42, %43 : vector<8x3xf32>
    %cst_26 = arith.constant dense<0.000000e+00> : vector<8x3xf32>
    %45 = tpu.matmul %3, %34, %cst_26 {dimension_numbers = #tpu.dot_dimension_numbers<[1], [0], [0], [1], [0, 0, 1, 1], [], []>} : vector<8x32xf32>, vector<32x3xf32>, vector<8x3xf32> -> vector<8x3xf32>
    %46 = vector.broadcast %35 : vector<1x3xf32> to vector<8x3xf32>
    %47 = arith.addf %45, %46 : vector<8x3xf32>
    %48 = arith.maximumf %38, %41 : vector<8x3xf32>
    %49 = arith.minimumf %38, %41 : vector<8x3xf32>
    %50 = arith.maximumf %44, %47 : vector<8x3xf32>
    %51 = arith.minimumf %44, %47 : vector<8x3xf32>
    %52 = arith.maximumf %49, %50 : vector<8x3xf32>
    %53 = arith.minimumf %49, %50 : vector<8x3xf32>
    %54 = arith.maximumf %48, %52 : vector<8x3xf32>
    %55 = arith.minimumf %48, %52 : vector<8x3xf32>
    %56 = arith.maximumf %53, %51 : vector<8x3xf32>
    %57 = arith.minimumf %53, %51 : vector<8x3xf32>
    %58 = arith.maximumf %55, %56 : vector<8x3xf32>
    %59 = arith.minimumf %55, %56 : vector<8x3xf32>
    %cst_27 = arith.constant 1.000000e+00 : f32
    %60 = vector.broadcast %cst_27 : f32 to vector<8x3xf32>
    %cst_28 = arith.constant 1.000000e+00 : f32
    %61 = vector.broadcast %cst_28 : f32 to vector<8x3xf32>
    %62 = arith.subf %57, %59 : vector<8x3xf32>
    %63 = math.exp %62 : vector<8x3xf32>
    %64 = arith.mulf %63, %61 : vector<8x3xf32>
    %cst_29 = arith.constant 1.000000e+00 : f32
    %65 = vector.broadcast %cst_29 : f32 to vector<8x3xf32>
    %66 = arith.addf %65, %64 : vector<8x3xf32>
    %67 = tpu.reciprocal %66 {approx = true} : vector<8x3xf32> -> vector<8x3xf32>
    %68 = arith.mulf %66, %67 : vector<8x3xf32>
    %cst_30 = arith.constant 2.000000e+00 : f32
    %69 = vector.broadcast %cst_30 : f32 to vector<8x3xf32>
    %70 = arith.subf %69, %68 : vector<8x3xf32>
    %71 = arith.mulf %67, %70 : vector<8x3xf32>
    %72 = arith.subf %59, %58 : vector<8x3xf32>
    %73 = math.exp %72 : vector<8x3xf32>
    %74 = arith.mulf %73, %66 : vector<8x3xf32>
    %cst_31 = arith.constant 1.000000e+00 : f32
    %75 = vector.broadcast %cst_31 : f32 to vector<8x3xf32>
    %76 = arith.addf %75, %74 : vector<8x3xf32>
    %77 = tpu.reciprocal %76 {approx = true} : vector<8x3xf32> -> vector<8x3xf32>
    %78 = arith.mulf %76, %77 : vector<8x3xf32>
    %cst_32 = arith.constant 2.000000e+00 : f32
    %79 = vector.broadcast %cst_32 : f32 to vector<8x3xf32>
    %80 = arith.subf %79, %78 : vector<8x3xf32>
    %81 = arith.mulf %77, %80 : vector<8x3xf32>
    %82 = arith.subf %58, %54 : vector<8x3xf32>
    %83 = math.exp %82 : vector<8x3xf32>
    %84 = arith.mulf %83, %76 : vector<8x3xf32>
    %cst_33 = arith.constant 1.000000e+00 : f32
    %85 = vector.broadcast %cst_33 : f32 to vector<8x3xf32>
    %86 = arith.addf %85, %84 : vector<8x3xf32>
    %87 = tpu.reciprocal %86 {approx = true} : vector<8x3xf32> -> vector<8x3xf32>
    %88 = arith.mulf %86, %87 : vector<8x3xf32>
    %cst_34 = arith.constant 2.000000e+00 : f32
    %89 = vector.broadcast %cst_34 : f32 to vector<8x3xf32>
    %90 = arith.subf %89, %88 : vector<8x3xf32>
    %91 = arith.mulf %87, %90 : vector<8x3xf32>
    %92 = tpu.concatenate %91, %81, %71, %60 in 1 : vector<8x3xf32>, vector<8x3xf32>, vector<8x3xf32>, vector<8x3xf32> -> vector<8x12xf32>
    %c0_35 = arith.constant 0 : index
    %c0_36 = arith.constant 0 : index
    %93 = vector.load %arg9[%c0_35, %c0_36] : memref<8x12xf32, #tpu.memory_space<vmem>>, vector<8x12xf32>
    tpu.vector_store %arg9[%c0_35, %c0_36], %92 {strides = array<i32>} : memref<8x12xf32, #tpu.memory_space<vmem>>, vector<8x12xf32>,
    return
  }
  func.func @transform_0(%arg0: i32) -> (i32, i32) {
    %c0_i32 = arith.constant 0 : i32
    %c0_i32_0 = arith.constant 0 : i32
    return %arg0, %c0_i32 : i32, i32
  }
  func.func @transform_1(%arg0: i32) -> (i32, i32) {
    %c0_i32 = arith.constant 0 : i32
    %c0_i32_0 = arith.constant 0 : i32
    %c0_i32_1 = arith.constant 0 : i32
    return %c0_i32, %c0_i32_0 : i32, i32
  }
  func.func @transform_2(%arg0: i32) -> (i32, i32) {
    %c0_i32 = arith.constant 0 : i32
    %c0_i32_0 = arith.constant 0 : i32
    %c0_i32_1 = arith.constant 0 : i32
    return %c0_i32, %c0_i32_0 : i32, i32
  }
  func.func @transform_3(%arg0: i32) -> (i32, i32) {
    %c0_i32 = arith.constant 0 : i32
    %c0_i32_0 = arith.constant 0 : i32
    %c0_i32_1 = arith.constant 0 : i32
    return %c0_i32, %c0_i32_0 : i32, i32
  }
  func.func @transform_4(%arg0: i32) -> (i32, i32) {
    %c0_i32 = arith.constant 0 : i32
    %c0_i32_0 = arith.constant 0 : i32
    %c0_i32_1 = arith.constant 0 : i32
    return %c0_i32, %c0_i32_0 : i32, i32
  }
  func.func @transform_5(%arg0: i32) -> (i32, i32) {
    %c0_i32 = arith.constant 0 : i32
    %c0_i32_0 = arith.constant 0 : i32
    %c0_i32_1 = arith.constant 0 : i32
    return %c0_i32, %c0_i32_0 : i32, i32
  }
  func.func @transform_6(%arg0: i32) -> (i32, i32) {
    %c0_i32 = arith.constant 0 : i32
    %c0_i32_0 = arith.constant 0 : i32
    %c0_i32_1 = arith.constant 0 : i32
    return %c0_i32, %c0_i32_0 : i32, i32
  }
  func.func @transform_7(%arg0: i32) -> (i32, i32) {
    %c0_i32 = arith.constant 0 : i32
    %c0_i32_0 = arith.constant 0 : i32
    return %arg0, %c0_i32 : i32, i32
  }
  func.func @transform_8(%arg0: i32) -> (i32, i32) {
    %c0_i32 = arith.constant 0 : i32
    %c0_i32_0 = arith.constant 0 : i32
    return %arg0, %c0_i32 : i32, i32
  }
}

</mosaic_0001>

<llo_original>
// kernel: tpu_custom_call.1
$region0: #{tpu_custom_call.1}
  #allocation0 [shape = 'u32[]', space=smem, size = 0x4, offset = 0x4, fixed_abs, tag = 'smem constant byte address 0x4 - core index']
  #allocation1 [shape = 'u32[72,128]{1,0:T(1,128)}', space=vmem, size = 0x9000, scoped, tag = 'internal scratch']
  %s0 = inlined_call_operand.vmem [shape: f32[8,128], index: 0, kind: input, shape index: {}]
  %s1 = inlined_call_operand.vmem [shape: f32[32,16], index: 1, kind: input, shape index: {}]
  %s2 = inlined_call_operand.vmem [shape: f32[1,16], index: 2, kind: input, shape index: {}]
  %s3 = inlined_call_operand.vmem [shape: f32[16,3], index: 3, kind: input, shape index: {}]
  %s4 = inlined_call_operand.vmem [shape: f32[1,3], index: 4, kind: input, shape index: {}]
  %s5 = inlined_call_operand.vmem [shape: f32[32,3], index: 5, kind: input, shape index: {}]
  %s6 = inlined_call_operand.vmem [shape: f32[1,3], index: 6, kind: input, shape index: {}]
  %s7 = inlined_call_operand.vmem [shape: f32[8,3], index: 7, kind: output, shape index: {0}]
  %s8 = inlined_call_operand.hbm [shape: f32[8,12], index: 8, kind: output, shape index: {1}]
  %9 = xla_tuple %s7, %s8
  %s10 = sld [smem:[#allocation0]]
  $region46: #{tpu_custom_call.1} parent=0
    _
  %s12 = ssub.s32 1, %s10
  %s13 = scalar_select 0, %s12, %s10
  $region1: #{tpu_custom_call.1} parent=0
    #allocation2 [shape = 'u8[4096]{0}', space=vmem, size = 0x1000, scoped, tag = 'output window, operand 1, single buffered']
    #allocation3 [shape = 's32[1]{0}', space=sflag, size = 0x4, scoped, tag = 'scoped memory for tpu_custom_call.1']
    %14 = vsyncpa [#allocation3], 0
    // Predicated region
    $region2: #{tpu_custom_call.1} parent=1 // pred_check
      _
    $region3: #{tpu_custom_call.1} parent=1 // pred_check_branch
      %16 = sbr.rel (0) target = $region5
    $region4: #{tpu_custom_call.1} parent=1 // pred_region
      _
    $region5: #{tpu_custom_call.1} parent=1 // pred_fallthru
      _
    // Predicated region
    $region6: #{tpu_custom_call.1} parent=1 // pred_check
      _
    $region7: #{tpu_custom_call.1} parent=1 // pred_check_branch
      %18 = sbr.rel (0) target = $region9
    $region8: #{tpu_custom_call.1} parent=1 // pred_region
      _
    $region9: #{tpu_custom_call.1} parent=1 // pred_fallthru
      _
    // Predicated region
    $region10: #{tpu_custom_call.1} parent=1 // pred_check
      _
    $region11: #{tpu_custom_call.1} parent=1 // pred_check_branch
      %20 = sbr.rel (0) target = $region13
    $region12: #{tpu_custom_call.1} parent=1 // pred_region
      _
    $region13: #{tpu_custom_call.1} parent=1 // pred_fallthru
      _
    // Predicated region
    $region14: #{tpu_custom_call.1} parent=1 // pred_check
      _
    $region15: #{tpu_custom_call.1} parent=1 // pred_check_branch
      %22 = sbr.rel (0) target = $region17
    $region16: #{tpu_custom_call.1} parent=1 // pred_region
      _
    $region17: #{tpu_custom_call.1} parent=1 // pred_fallthru
      _
    // Predicated region
    $region18: #{tpu_custom_call.1} parent=1 // pred_check
      _
    $region19: #{tpu_custom_call.1} parent=1 // pred_check_branch
      %24 = sbr.rel (0) target = $region21
    $region20: #{tpu_custom_call.1} parent=1 // pred_region
      _
    $region21: #{tpu_custom_call.1} parent=1 // pred_fallthru
      _
    // Predicated region
    $region22: #{tpu_custom_call.1} parent=1 // pred_check
      _
    $region23: #{tpu_custom_call.1} parent=1 // pred_check_branch
      %26 = sbr.rel (0) target = $region25
    $region24: #{tpu_custom_call.1} parent=1 // pred_region
      _
    $region25: #{tpu_custom_call.1} parent=1 // pred_fallthru
      _
    // Predicated region
    $region26: #{tpu_custom_call.1} parent=1 // pred_check
      _
    $region27: #{tpu_custom_call.1} parent=1 // pred_check_branch
      %28 = sbr.rel (0) target = $region29
    $region28: #{tpu_custom_call.1} parent=1 // pred_region
      _
    $region29: #{tpu_custom_call.1} parent=1 // pred_fallthru
      _
    %v29 = vld [vmem:[%s0] sm:$0xff]
    %31 = vrot.lane.b32.xlu0 %v29, 96
    %v32 = vpop.permute.xlu0 %31
    %v34 = vadd.f32 %v29, %v32
    %35 = vrot.lane.b32.xlu0 %v29, 64
    %v36 = vpop.permute.xlu0 %35
    %v38 = vadd.f32 %v34, %v36
    %39 = vrot.lane.b32.xlu0 %v29, 32
    %v40 = vpop.permute.xlu0 %39
    %v42 = vadd.f32 %v38, %v40
    %v43 = vld [vmem:[%s1] sm:$0xff]
    %v44 = vld [vmem:[%s1 + $0x8] sm:$0xff]
    %v45 = vld [vmem:[%s1 + $0x10] sm:$0xff]
    %v46 = vld [vmem:[%s1 + $0x18] sm:$0xff]
    %v47 = vld [vmem:[%s2] sm:$0x1]
    %v49 = vperm.slane %v47, 0
    %vm51 = vcmask 261120
    %v53 = vsel %vm51, %v42, 0
    %55 = vmatpush.msra.mxu0 0.0
    %56 = vmatpush.msra.mxu0 0.0
    %57 = vmatpush.msra.mxu0 0.0
    %58 = vmatpush.msra.mxu0 0.0
    %59 = vmatpush.msra.mxu0 0.0
    %60 = vmatpush.msra.mxu0 0.0
    %61 = vmatpush.msra.mxu0 0.0
    %62 = vmatpush.msra.mxu0 0.0
    %63 = vmatpush.msra.mxu0 0.0
    %64 = vmatpush.msra.mxu0 0.0
    %65 = vmatpush.msra.mxu0 0.0
    %66 = vmatpush.msra.mxu0 0.0
    %67 = vmatpush.msra.mxu0 %v46
    %68 = vmatpush.msra.mxu0 %v45
    %69 = vmatpush.msra.mxu0 %v44
    %70 = vmatpush.msra.mxu0 %v43
    %71 = vmatmul.f32.gmra.mxu0 %v53
    %v72 = vpop.f32.mrf.mxu0
    %v73 = vadd.f32 %v49, %v72
    %74 = vdwg.mxu0
    %v75 = vmax.f32 %v73, 0.0
    %v76 = vld [vmem:[%s3] sm:$0xff]
    %v77 = vld [vmem:[%s3 + $0x8] sm:$0xff]
    %v78 = vld [vmem:[%s4] sm:$0x1]
    %v80 = vperm.slane %v78, 0
    %vm82 = vcmask 130048
    %v84 = vsel %vm82, %v75, 0
    %86 = vmatpush.msra.mxu0 0.0
    %87 = vmatpush.msra.mxu0 0.0
    %88 = vmatpush.msra.mxu0 0.0
    %89 = vmatpush.msra.mxu0 0.0
    %90 = vmatpush.msra.mxu0 0.0
    %91 = vmatpush.msra.mxu0 0.0
    %92 = vmatpush.msra.mxu0 0.0
    %93 = vmatpush.msra.mxu0 0.0
    %94 = vmatpush.msra.mxu0 0.0
    %95 = vmatpush.msra.mxu0 0.0
    %96 = vmatpush.msra.mxu0 0.0
    %97 = vmatpush.msra.mxu0 0.0
    %98 = vmatpush.msra.mxu0 0.0
    %99 = vmatpush.msra.mxu0 0.0
    %100 = vmatpush.msra.mxu0 %v77
    %101 = vmatpush.msra.mxu0 %v76
    %102 = vmatmul.f32.gmra.mxu0 %v84
    %v103 = vpop.f32.mrf.mxu0
    %v104 = vadd.f32 %v80, %v103
    %105 = vdwg.mxu0
    %vm106 = vcmask 23552
    %v107 = vsel %vm106, %v104, -inf
    %108 = vmax.xlane.f32.xlu0 %v107
    %v109 = vpop.xlane.xlu0 %108
    %v110 = vsub.f32 %v104, %v109
    %v111 = vmul.f32 %v110, 1.442695
    %v112 = vpow.pop %v111
    %v113 = vsel %vm106, %v112, 0.0
    %114 = vadd.xlane.f32.xlu0 %v113
    %v115 = vpop.xlane.xlu0 %114
    %v116 = vrcp.pop %v115
    %v117 = vmul.f32 %v115, %v116
    %v118 = vsub.f32 2.0, %v117
    %v119 = vmul.f32 %v116, %v118
    %v120 = vmul.f32 %v112, %v119
    %121 = vst.msk [vmem:[%s7] sm:$0xff] %vm106, %v120
    %v122 = vld [vmem:[%s5] sm:$0xff]
    %v123 = vld [vmem:[%s5 + $0x8] sm:$0xff]
    %v124 = vld [vmem:[%s5 + $0x10] sm:$0xff]
    %v125 = vld [vmem:[%s5 + $0x18] sm:$0xff]
    %v126 = vld [vmem:[%s6] sm:$0x1]
    %v128 = vperm.slane %v126, 0
    %v130 = vsel %vm51, %v29, 0
    %132 = vmatpush.msra.mxu0 0.0
    %133 = vmatpush.msra.mxu0 0.0
    %134 = vmatpush.msra.mxu0 0.0
    %135 = vmatpush.msra.mxu0 0.0
    %136 = vmatpush.msra.mxu0 0.0
    %137 = vmatpush.msra.mxu0 0.0
    %138 = vmatpush.msra.mxu0 0.0
    %139 = vmatpush.msra.mxu0 0.0
    %140 = vmatpush.msra.mxu0 0.0
    %141 = vmatpush.msra.mxu0 0.0
    %142 = vmatpush.msra.mxu0 0.0
    %143 = vmatpush.msra.mxu0 0.0
    %144 = vmatpush.msra.mxu0 %v125
    %145 = vmatpush.msra.mxu0 %v124
    %146 = vmatpush.msra.mxu0 %v123
    %147 = vmatpush.msra.mxu0 %v122
    %148 = vmatmul.f32.gmra.mxu0 %v130
    %v149 = vpop.f32.mrf.mxu0
    %v150 = vadd.f32 %v128, %v149
    %151 = vdwg.mxu0
    %v152 = vsel %vm51, %v32, 0
    %154 = vmatpush.msra.mxu0 0.0
    %155 = vmatpush.msra.mxu0 0.0
    %156 = vmatpush.msra.mxu0 0.0
    %157 = vmatpush.msra.mxu0 0.0
    %158 = vmatpush.msra.mxu0 0.0
    %159 = vmatpush.msra.mxu0 0.0
    %160 = vmatpush.msra.mxu0 0.0
    %161 = vmatpush.msra.mxu0 0.0
    %162 = vmatpush.msra.mxu0 0.0
    %163 = vmatpush.msra.mxu0 0.0
    %164 = vmatpush.msra.mxu0 0.0
    %165 = vmatpush.msra.mxu0 0.0
    %166 = vmatpush.msra.mxu0 %v125
    %167 = vmatpush.msra.mxu0 %v124
    %168 = vmatpush.msra.mxu0 %v123
    %169 = vmatpush.msra.mxu0 %v122
    %170 = vmatmul.f32.gmra.mxu0 %v152
    %v171 = vpop.f32.mrf.mxu0
    %v172 = vadd.f32 %v128, %v171
    %173 = vdwg.mxu0
    %v174 = vsel %vm51, %v36, 0
    %176 = vmatpush.msra.mxu0 0.0
    %177 = vmatpush.msra.mxu0 0.0
    %178 = vmatpush.msra.mxu0 0.0
    %179 = vmatpush.msra.mxu0 0.0
    %180 = vmatpush.msra.mxu0 0.0
    %181 = vmatpush.msra.mxu0 0.0
    %182 = vmatpush.msra.mxu0 0.0
    %183 = vmatpush.msra.mxu0 0.0
    %184 = vmatpush.msra.mxu0 0.0
    %185 = vmatpush.msra.mxu0 0.0
    %186 = vmatpush.msra.mxu0 0.0
    %187 = vmatpush.msra.mxu0 0.0
    %188 = vmatpush.msra.mxu0 %v125
    %189 = vmatpush.msra.mxu0 %v124
    %190 = vmatpush.msra.mxu0 %v123
    %191 = vmatpush.msra.mxu0 %v122
    %192 = vmatmul.f32.gmra.mxu0 %v174
    %v193 = vpop.f32.mrf.mxu0
    %v194 = vadd.f32 %v128, %v193
    %195 = vdwg.mxu0
    %v196 = vsel %vm51, %v40, 0
    %198 = vmatpush.msra.mxu0 0.0
    %199 = vmatpush.msra.mxu0 0.0
    %200 = vmatpush.msra.mxu0 0.0
    %201 = vmatpush.msra.mxu0 0.0
    %202 = vmatpush.msra.mxu0 0.0
    %203 = vmatpush.msra.mxu0 0.0
    %204 = vmatpush.msra.mxu0 0.0
    %205 = vmatpush.msra.mxu0 0.0
    %206 = vmatpush.msra.mxu0 0.0
    %207 = vmatpush.msra.mxu0 0.0
    %208 = vmatpush.msra.mxu0 0.0
    %209 = vmatpush.msra.mxu0 0.0
    %210 = vmatpush.msra.mxu0 %v125
    %211 = vmatpush.msra.mxu0 %v124
    %212 = vmatpush.msra.mxu0 %v123
    %213 = vmatpush.msra.mxu0 %v122
    %214 = vmatmul.f32.gmra.mxu0 %v196
    %v215 = vpop.f32.mrf.mxu0
    %v216 = vadd.f32 %v128, %v215
    %217 = vdwg.mxu0
    %v218 = vmax.f32 %v150, %v172
    %v219 = vmin.f32 %v150, %v172
    %v220 = vmax.f32 %v194, %v216
    %v221 = vmin.f32 %v194, %v216
    %v222 = vmax.f32 %v219, %v220
    %v223 = vmin.f32 %v219, %v220
    %v224 = vmax.f32 %v218, %v222
    %v225 = vmin.f32 %v218, %v222
    %v226 = vmax.f32 %v223, %v221
    %v227 = vmin.f32 %v223, %v221
    %v228 = vmax.f32 %v225, %v226
    %v229 = vmin.f32 %v225, %v226
    %v230 = vsub.f32 %v227, %v229
    %v231 = vmul.f32 %v230, 1.442695
    %v232 = vpow.pop %v231
    %v233 = vadd.f32 %v232, 1.0
    %v234 = vrcp.pop %v233
    %v235 = vmul.f32 %v233, %v234
    %v236 = vsub.f32 2.0, %v235
    %v237 = vmul.f32 %v234, %v236
    %v238 = vsub.f32 %v229, %v228
    %v239 = vmul.f32 %v238, 1.442695
    %v240 = vpow.pop %v239
    %v241 = vmul.f32 %v240, %v233
    %v242 = vadd.f32 %v241, 1.0
    %v243 = vrcp.pop %v242
    %v244 = vmul.f32 %v242, %v243
    %v245 = vsub.f32 2.0, %v244
    %v246 = vmul.f32 %v243, %v245
    %v247 = vsub.f32 %v228, %v224
    %v248 = vmul.f32 %v247, 1.442695
    %v249 = vpow.pop %v248
    %v250 = vmul.f32 %v249, %v242
    %v251 = vadd.f32 %v250, 1.0
    %v252 = vrcp.pop %v251
    %v253 = vmul.f32 %v251, %v252
    %v254 = vsub.f32 2.0, %v253
    %v255 = vmul.f32 %v252, %v254
    %257 = vrot.lane.b32.xlu0 %v246, 3
    %v258 = vpop.permute.xlu0 %257
    %261 = vrot.lane.b32.xlu0 %v237, 6
    %v262 = vpop.permute.xlu0 %261
    %v264 = vsel %vm106, %v255, %v258
    %vm265 = vcmask 48128
    %v266 = vsel %vm265, %v264, %v262
    %vm267 = vcmask 72704
    %v268 = vsel %vm267, %v266, 1.0
    %vm269 = vcmask 97280
    %270 = vst.msk [vmem:[#allocation2] sm:$0xff] %vm269, %v268
    // Predicated region
    $region30: #{tpu_custom_call.1} parent=1 // pred_check
      _
    $region31: #{tpu_custom_call.1} parent=1 // pred_check_branch
      %272 = sbr.rel (0) target = $region33
    $region32: #{tpu_custom_call.1} parent=1 // pred_region
      _
    $region33: #{tpu_custom_call.1} parent=1 // pred_fallthru
      _
    // Predicated region
    $region34: #{tpu_custom_call.1} parent=1 // pred_check
      _
    $region35: #{tpu_custom_call.1} parent=1 // pred_check_branch
      %274 = sbr.rel (0) target = $region37
    $region36: #{tpu_custom_call.1} parent=1 // pred_region
      %276 = vsyncadd [#allocation3], 0
      %s278 = sshll.u32 [#allocation2], 4
      %s279 = int_to_ptr.vmem [resolvable:$true] %s278
      %s280 = sshll.u32 %s8, 4
      %s281 = int_to_ptr.hbm [resolvable:$true] %s280
      %283 = dma.vmem_to_hbm [thread:$0]  %s279, 128, %s281, [#allocation3]
    $region37: #{tpu_custom_call.1} parent=1 // pred_fallthru
      _
    // Predicated region
    $region38: #{tpu_custom_call.1} parent=1 // pred_check
      _
    $region39: #{tpu_custom_call.1} parent=1 // pred_check_branch
      %285 = sbr.rel (0) target = $region41
    $region40: #{tpu_custom_call.1} parent=1 // pred_region
      _
    $region41: #{tpu_custom_call.1} parent=1 // pred_fallthru
      _
    // Predicated region
    $region42: #{tpu_custom_call.1} parent=1 // pred_check
      _
    $region43: #{tpu_custom_call.1} parent=1 // pred_check_branch
      %287 = sbr.rel (0) target = $region45
    $region44: #{tpu_custom_call.1} parent=1 // pred_region
      %289 = dma.done [#allocation3], 128
    $region45: #{tpu_custom_call.1} parent=1 // pred_fallthru
      _
    %290 = vsyncpa [#allocation3], 1

</llo_original>
